<compile_context>
chip_gen: v5e
topology: v5e:2x2
jax: 0.10.0
libtpu: 0.0.40
codegen_flags: <defaults>
</compile_context>

<pallas_src>
import functools

import numpy as np

import jax
import jax.numpy as jnp
from jax.experimental import pallas as pl
from jax.experimental.pallas import tpu as pltpu
from jax.scipy.special import betaln


# ----------------------------------------------------------------------------
# Deterministic stand-in for TipGeometry (shapes match module __init__):
#   alpha_corrections(h, approx_order) -> (approx_order + 1,)
#   beta_corrections(approx_order)     -> (approx_order + 1,)
# ----------------------------------------------------------------------------
def tip_alpha_corrections(h: float, approx_order: int) -> jnp.ndarray:
    k = jnp.arange(approx_order + 1, dtype=jnp.float32)
    return (1.0 / (1.0 + h)) ** k  # deterministic geometric decay


def tip_beta_corrections(approx_order: int) -> jnp.ndarray:
    # conical-tip-like exponents 2, 3, 4, ...
    return 2.0 + jnp.arange(approx_order + 1, dtype=jnp.float32)


def _round_up(x: int, m: int) -> int:
    return ((x + m - 1) // m) * m


# ----------------------------------------------------------------------------
# Pallas kernel: per-element force evaluation
#   t_eff = t                                 if t <= t_max   (approach)
#         = relu(t - (t - t_max) * 2^(1/(1-gamma)))           (retraction, t1)
#   F     = sum_k coef_k * t_eff ** expo_k          (E0 already folded in)
# ----------------------------------------------------------------------------
def _force_kernel(scal_ref, coef_ref, expo_ref, t_ref, f_ref, *, K, horner):
    t_max = scal_ref[0]
    pow2 = scal_ref[1]                          # 2 ** (1 / (1 - gamma))

    t = t_ref[...]                              # (TILE_R, 128) f32
    # Branch-free t_eff for t >= 0: relu(t - relu(t - t_max) * pow2)
    # (approach branch keeps t unchanged since relu(t - t_max) == 0 there).
    t_eff = jnp.maximum(t - jnp.maximum(t - t_max, 0.0) * pow2, 0.0)

    lt = jnp.log(t_eff)                         # one EUP log per element
    if horner:
        # expo_k = expo_0 + k  ->  t_eff**expo_k = t_eff**expo_0 * t_eff**k
        base = jnp.exp(expo_ref[0] * lt)        # one EUP exp per element
        acc = jnp.zeros_like(t) + coef_ref[K - 1]
        for k in range(K - 2, -1, -1):          # Horner: pure VPU mul/add
            acc = acc * t_eff + coef_ref[k]
        f_ref[...] = acc * base
    else:
        # General path: 1 log + K exps (vs 2K transcendentals via jnp.power).
        acc = jnp.zeros_like(t)
        for k in range(K):
            acc = acc + coef_ref[k] * jnp.exp(expo_ref[k] * lt)
        f_ref[...] = acc


def _betas_consecutive(betas) -> bool:
    """True when betas = (b0, b0+1, b0+2, ...) -> enables the Horner path."""
    try:
        b = np.asarray(jax.device_get(betas), dtype=np.float64).reshape(-1)
    except Exception:          # traced betas -> use the general path
        return False
    return b.size < 2 or bool(np.allclose(np.diff(b), 1.0, atol=1e-6))


# ----------------------------------------------------------------------------
# Wrapper: parameter setup + padding/layout + pallas_call + output partition
# ----------------------------------------------------------------------------
def plr_triangular_force(t, *, alphas, betas, v, t_max, E0, gamma_raw, t0=1.0):
    t_flat = t.reshape(-1).astype(jnp.float32)            # t.view(-1)
    n = t_flat.shape[0]

    gamma = jnp.clip(jnp.float32(gamma_raw), 0.0, 1.0)    # clamp(_gamma, 0, 1)
    # E0 folded into coeff:
    #   coeff = E0 * alphas*betas*Beta(betas, 1-gamma) * v**betas * t0**gamma
    coeff = (jnp.float32(E0) * alphas * betas
             * jnp.exp(betaln(betas, 1.0 - gamma))
             * (jnp.float32(v) ** betas) * (jnp.float32(t0) ** gamma))
    expo = betas - gamma                                   # exponent of t_eff
    pow2 = jnp.power(jnp.float32(2.0), 1.0 / (1.0 - gamma))
    scal = jnp.stack([jnp.float32(t_max), pow2]).astype(jnp.float32)
    K = int(coeff.shape[0])
    horner = _betas_consecutive(betas)

    # ---- layout: pack into (rows, 128) f32, lanes on the last dim ----------
    TILE_C = 128
    MAX_TILE_R = 512      # (512,128) f32 = 256 KiB / block; in+out double-
                          # buffered ~1 MiB -> safely under scoped VMEM on
                          # v5e/v6e (32 MiB) and v7x (32 MiB of 64 MiB).
    rows_needed = max(1, -(-n // TILE_C))
    rows8 = _round_up(rows_needed, 8)
    if rows8 <= 2 * MAX_TILE_R:
        # Split into ~2 tiles so the parallel grid can shard across both v7x
        # TensorCores (no effect on single-TC v5e/v6e).
        TILE_R = _round_up(-(-rows8 // 2), 8)
    else:
        TILE_R = MAX_TILE_R
    rows = _round_up(rows8, TILE_R)
    n_pad = rows * TILE_C
    # Pad with 1.0 so log() of padded lanes is finite (padded results dropped).
    t_pad = jnp.full((n_pad,), 1.0, jnp.float32).at[:n].set(t_flat)
    t2d = t_pad.reshape(rows, TILE_C)

    kernel = functools.partial(_force_kernel, K=K, horner=horner)
    f2d = pl.pallas_call(
        kernel,
        out_shape=jax.ShapeDtypeStruct((rows, TILE_C), jnp.float32),
        grid=(rows // TILE_R,),
        in_specs=[
            pl.BlockSpec(memory_space=pltpu.MemorySpace.SMEM),  # scalars (2,)
            pl.BlockSpec(memory_space=pltpu.MemorySpace.SMEM),  # coeff (K,)
            pl.BlockSpec(memory_space=pltpu.MemorySpace.SMEM),  # expo  (K,)
            pl.BlockSpec((TILE_R, TILE_C), lambda i: (i, 0)),
        ],
        out_specs=pl.BlockSpec((TILE_R, TILE_C), lambda i: (i, 0)),
        compiler_params=pltpu.CompilerParams(
            dimension_semantics=("parallel",)),
    )(scal, coeff.astype(jnp.float32), expo.astype(jnp.float32), t2d)

    f_flat = f2d.reshape(-1)[:n]

    # torch.cat([F[t<=t_max], F[t>t_max]]) == stable partition, approach first.
    # Cumsum-based destination indices + scatter (replaces argsort + gather).
    # TODO(synk): boolean-mask split with dynamic output sizes has no JAX/Pallas
    # equivalent; this stable permutation reproduces the concatenated order.
    is_app = t_flat <= jnp.float32(t_max)
    app_i32 = is_app.astype(jnp.int32)
    idx_app = jnp.cumsum(app_i32) - 1
    n_app = idx_app[-1] + 1
    idx_ret = n_app + jnp.cumsum(1 - app_i32) - 1
    dest = jnp.where(is_app, idx_app, idx_ret)
    return jnp.zeros((n,), jnp.float32).at[dest].set(f_flat)


# ----------------------------------------------------------------------------
# Pure-JAX reference (same math, no Pallas) for verification
# ----------------------------------------------------------------------------
def plr_triangular_force_ref(t, *, alphas, betas, v, t_max, E0, gamma_raw,
                             t0=1.0):
    t_flat = t.reshape(-1).astype(jnp.float32)
    gamma = jnp.clip(jnp.float32(gamma_raw), 0.0, 1.0)

    def approach(tt):
        tt = tt[..., None]
        coeff = alphas * betas * jnp.exp(betaln(betas, 1.0 - gamma))
        term1 = jnp.float32(v) ** betas * jnp.float32(t0) ** gamma
        term2 = tt ** (betas - gamma)
        return jnp.float32(E0) * jnp.sum(coeff * term1 * term2, axis=-1)

    t1 = jnp.maximum(
        t_flat - (t_flat - jnp.float32(t_max))
        * jnp.power(jnp.float32(2.0), 1.0 / (1.0 - gamma)), 0.0)
    is_app = t_flat <= jnp.float32(t_max)
    f_elem = jnp.where(is_app, approach(t_flat), approach(t1))
    order = jnp.argsort((~is_app).astype(jnp.int32), stable=True)
    return f_elem[order]


if __name__ == "__main__":
    # Deterministic module "constructor" parameters.
    h = 0.2
    approx_order = 3                      # -> K = 4 correction terms
    v = 1.0
    t_max = 0.5
    E0 = 0.572
    gamma_raw = 0.42
    t0 = 1.0

    alphas = tip_alpha_corrections(h, approx_order)   # (4,)
    betas = tip_beta_corrections(approx_order)        # (4,)

    # Deterministic input: forward() flattens, so any shape works.
    key = jax.random.PRNGKey(0)
    t = jax.random.uniform(key, (2, 8), dtype=jnp.float32,
                           minval=0.05, maxval=1.0)

    out = plr_triangular_force(
        t, alphas=alphas, betas=betas, v=v, t_max=t_max,
        E0=E0, gamma_raw=gamma_raw, t0=t0)
    out = jax.block_until_ready(out)

    ref = plr_triangular_force_ref(
        t, alphas=alphas, betas=betas, v=v, t_max=t_max,
        E0=E0, gamma_raw=gamma_raw, t0=t0)
    ref = jax.block_until_ready(ref)

    assert out.shape == (t.size,), (out.shape, t.size)
    assert jnp.allclose(out, ref, rtol=1e-4, atol=1e-5), (out, ref)
    print("KERNEL_OK")
</pallas_src>

<mosaic_0001>
module attributes {stable_mosaic.version = 11 : i64} {
  func.func @_force_kernel(%arg0: i32, %arg1: memref<2xf32, #tpu.memory_space<smem>>, %arg2: memref<4xf32, #tpu.memory_space<smem>>, %arg3: memref<4xf32, #tpu.memory_space<smem>>, %arg4: memref<8x128xf32, #tpu.memory_space<vmem>>, %arg5: memref<8x128xf32, #tpu.memory_space<vmem>>) attributes {dimension_semantics = [#tpu.dimension_semantics<parallel>], iteration_bounds = array<i64: 1>, scalar_prefetch = 0 : i64, scratch_operands = 0 : i64, tpu.core_type = #tpu.core_type<tc>, window_params = [{transform_indices = @transform_0, window_bounds = array<i64: 2>}, {transform_indices = @transform_1, window_bounds = array<i64: 4>}, {transform_indices = @transform_2, window_bounds = array<i64: 4>}, {transform_indices = @transform_3, window_bounds = array<i64: 8, 128>}, {transform_indices = @transform_4, window_bounds = array<i64: 8, 128>}]} {
    %c0 = arith.constant 0 : index
    %0 = memref.load %arg1[%c0] : memref<2xf32, #tpu.memory_space<smem>>
    %c1 = arith.constant 1 : index
    %1 = memref.load %arg1[%c1] : memref<2xf32, #tpu.memory_space<smem>>
    %c0_0 = arith.constant 0 : index
    %c0_1 = arith.constant 0 : index
    %2 = vector.load %arg4[%c0_0, %c0_1] : memref<8x128xf32, #tpu.memory_space<vmem>>, vector<8x128xf32>
    %3 = vector.broadcast %0 : f32 to vector<8x128xf32>
    %4 = arith.subf %2, %3 : vector<8x128xf32>
    %cst = arith.constant 0.000000e+00 : f32
    %5 = vector.broadcast %cst : f32 to vector<8x128xf32>
    %6 = arith.maximumf %4, %5 : vector<8x128xf32>
    %7 = vector.broadcast %1 : f32 to vector<8x128xf32>
    %8 = arith.mulf %6, %7 : vector<8x128xf32>
    %9 = arith.subf %2, %8 : vector<8x128xf32>
    %cst_2 = arith.constant 0.000000e+00 : f32
    %10 = vector.broadcast %cst_2 : f32 to vector<8x128xf32>
    %11 = arith.maximumf %9, %10 : vector<8x128xf32>
    %12 = math.log %11 : vector<8x128xf32>
    %c0_3 = arith.constant 0 : index
    %13 = memref.load %arg3[%c0_3] : memref<4xf32, #tpu.memory_space<smem>>
    %14 = vector.broadcast %13 : f32 to vector<8x128xf32>
    %15 = arith.mulf %14, %12 : vector<8x128xf32>
    %16 = math.exp %15 : vector<8x128xf32>
    %cst_4 = arith.constant 0.000000e+00 : f32
    %17 = vector.broadcast %cst_4 : f32 to vector<8x128xf32>
    %c3 = arith.constant 3 : index
    %18 = memref.load %arg2[%c3] : memref<4xf32, #tpu.memory_space<smem>>
    %19 = vector.broadcast %18 : f32 to vector<8x128xf32>
    %20 = arith.addf %17, %19 : vector<8x128xf32>
    %21 = arith.mulf %20, %11 : vector<8x128xf32>
    %c2 = arith.constant 2 : index
    %22 = memref.load %arg2[%c2] : memref<4xf32, #tpu.memory_space<smem>>
    %23 = vector.broadcast %22 : f32 to vector<8x128xf32>
    %24 = arith.addf %21, %23 : vector<8x128xf32>
    %25 = arith.mulf %24, %11 : vector<8x128xf32>
    %c1_5 = arith.constant 1 : index
    %26 = memref.load %arg2[%c1_5] : memref<4xf32, #tpu.memory_space<smem>>
    %27 = vector.broadcast %26 : f32 to vector<8x128xf32>
    %28 = arith.addf %25, %27 : vector<8x128xf32>
    %29 = arith.mulf %28, %11 : vector<8x128xf32>
    %c0_6 = arith.constant 0 : index
    %30 = memref.load %arg2[%c0_6] : memref<4xf32, #tpu.memory_space<smem>>
    %31 = vector.broadcast %30 : f32 to vector<8x128xf32>
    %32 = arith.addf %29, %31 : vector<8x128xf32>
    %33 = arith.mulf %32, %16 : vector<8x128xf32>
    %c0_7 = arith.constant 0 : index
    %c0_8 = arith.constant 0 : index
    %34 = vector.load %arg5[%c0_7, %c0_8] : memref<8x128xf32, #tpu.memory_space<vmem>>, vector<8x128xf32>
    tpu.vector_store %arg5[%c0_7, %c0_8], %33 {strides = array<i32>} : memref<8x128xf32, #tpu.memory_space<vmem>>, vector<8x128xf32>,
    return
  }
  func.func @transform_0(%arg0: i32) -> i32 {
    %c0_i32 = arith.constant 0 : i32
    %c0_i32_0 = arith.constant 0 : i32
    return %c0_i32 : i32
  }
  func.func @transform_1(%arg0: i32) -> i32 {
    %c0_i32 = arith.constant 0 : i32
    %c0_i32_0 = arith.constant 0 : i32
    return %c0_i32 : i32
  }
  func.func @transform_2(%arg0: i32) -> i32 {
    %c0_i32 = arith.constant 0 : i32
    %c0_i32_0 = arith.constant 0 : i32
    return %c0_i32 : i32
  }
  func.func @transform_3(%arg0: i32) -> (i32, i32) {
    %c0_i32 = arith.constant 0 : i32
    %c0_i32_0 = arith.constant 0 : i32
    return %arg0, %c0_i32 : i32, i32
  }
  func.func @transform_4(%arg0: i32) -> (i32, i32) {
    %c0_i32 = arith.constant 0 : i32
    %c0_i32_0 = arith.constant 0 : i32
    return %arg0, %c0_i32 : i32, i32
  }
}

</mosaic_0001>

<llo_original>
// kernel: tpu_custom_call.1
$region0: #{tpu_custom_call.1}
  #allocation0 [shape = 'u32[]', space=smem, size = 0x4, offset = 0x4, fixed_abs, tag = 'smem constant byte address 0x4 - core index']
  #allocation1 [shape = 'u32[72,128]{1,0:T(1,128)}', space=vmem, size = 0x9000, scoped, tag = 'internal scratch']
  %s0 = inlined_call_operand.hbm [shape: f32[2], index: 0, kind: input, shape index: {}]
  %s1 = inlined_call_operand.hbm [shape: f32[4], index: 1, kind: input, shape index: {}]
  %s2 = inlined_call_operand.vmem [shape: f32[4], index: 2, kind: input, shape index: {}]
  %s3 = inlined_call_operand.hbm [shape: f32[8,128], index: 3, kind: input, shape index: {}]
  %s4 = inlined_call_operand.hbm [shape: f32[8,128], index: 4, kind: output, shape index: {}]
  %s5 = sld [smem:[#allocation0]]
  $region42: #{tpu_custom_call.1} parent=0
    _
  %s7 = ssub.s32 1, %s5
  %s8 = scalar_select 0, %s7, %s5
  $region1: #{tpu_custom_call.1} parent=0
    #allocation2 [shape = 'u8[512]{0}', space=smem, size = 0x200, scoped, tag = 'input window, operand 0, single buffered']
    #allocation3 [shape = 's32[1]{0}', space=sflag, size = 0x4, scoped, tag = 'scoped memory for tpu_custom_call.1']
    #allocation4 [shape = 's32[1]{0}', space=sflag, size = 0x4, scoped, tag = 'scoped memory for tpu_custom_call.1']
    #allocation5 [shape = 's32[1]{0}', space=sflag, size = 0x4, scoped, tag = 'scoped memory for tpu_custom_call.1']
    #allocation6 [shape = 's32[1]{0}', space=sflag, size = 0x4, scoped, tag = 'scoped memory for tpu_custom_call.1']
    #allocation7 [shape = 'u8[512]{0}', space=smem, size = 0x200, scoped, tag = 'input window, operand 1, single buffered']
    #allocation8 [shape = 's32[1]{0}', space=sflag, size = 0x4, scoped, tag = 'scoped memory for tpu_custom_call.1']
    #allocation9 [shape = 'u8[512]{0}', space=smem, size = 0x200, scoped, tag = 'input window, operand 2, single buffered']
    #allocation10 [shape = 'u8[4096]{0}', space=vmem, size = 0x1000, scoped, tag = 'input window, operand 3, single buffered']
    #allocation11 [shape = 'u8[4096]{0}', space=vmem, size = 0x1000, scoped, tag = 'output window, operand 0, single buffered']
    %9 = vsyncpa [#allocation5], 0
    %10 = vsyncpa [#allocation8], 0
    %11 = vsyncpa [#allocation6], 0
    %12 = vsyncpa [#allocation3], 0
    %13 = vsyncpa [#allocation4], 0
    // Predicated region
    $region2: #{tpu_custom_call.1} parent=1 // pred_check
      _
    $region3: #{tpu_custom_call.1} parent=1 // pred_check_branch
      %15 = sbr.rel (0) target = $region5
    $region4: #{tpu_custom_call.1} parent=1 // pred_region
      %17 = vsyncadd [#allocation5], 0
      %s19 = sshll.u32 %s0, 4
      %s20 = int_to_ptr.hbm [resolvable:$true] %s19
      %22 = dma.hbm_to_smem %s20, 16, [#allocation2], [#allocation5]
    $region5: #{tpu_custom_call.1} parent=1 // pred_fallthru
      _
    // Predicated region
    $region6: #{tpu_custom_call.1} parent=1 // pred_check
      _
    $region7: #{tpu_custom_call.1} parent=1 // pred_check_branch
      %24 = sbr.rel (0) target = $region9
    $region8: #{tpu_custom_call.1} parent=1 // pred_region
      %26 = vsyncadd [#allocation8], 0
      %s28 = sshll.u32 %s1, 4
      %s29 = int_to_ptr.hbm [resolvable:$true] %s28
      %31 = dma.hbm_to_smem %s29, 16, [#allocation7], [#allocation8]
    $region9: #{tpu_custom_call.1} parent=1 // pred_fallthru
      _
    // Predicated region
    $region10: #{tpu_custom_call.1} parent=1 // pred_check
      _
    $region11: #{tpu_custom_call.1} parent=1 // pred_check_branch
      %33 = sbr.rel (0) target = $region13
    $region12: #{tpu_custom_call.1} parent=1 // pred_region
      %35 = vsyncadd [#allocation6], 0
      %s37 = sshll.u32 %s2, 4
      %s38 = int_to_ptr.vmem [resolvable:$true] %s37
      %40 = dma.vmem_to_smem %s38, 16, [#allocation9], [#allocation6]
    $region13: #{tpu_custom_call.1} parent=1 // pred_fallthru
      _
    // Predicated region
    $region14: #{tpu_custom_call.1} parent=1 // pred_check
      _
    $region15: #{tpu_custom_call.1} parent=1 // pred_check_branch
      %42 = sbr.rel (0) target = $region17
    $region16: #{tpu_custom_call.1} parent=1 // pred_region
      %44 = vsyncadd [#allocation3], 0
      %s46 = sshll.u32 %s3, 4
      %s47 = int_to_ptr.hbm [resolvable:$true] %s46
      %s48 = sshll.u32 [#allocation10], 4
      %s49 = int_to_ptr.vmem [resolvable:$true] %s48
      %51 = dma.hbm_to_vmem [thread:$0]  %s47, 128, %s49, [#allocation3]
    $region17: #{tpu_custom_call.1} parent=1 // pred_fallthru
      _
    // Predicated region
    $region18: #{tpu_custom_call.1} parent=1 // pred_check
      _
    $region19: #{tpu_custom_call.1} parent=1 // pred_check_branch
      %53 = sbr.rel (0) target = $region21
    $region20: #{tpu_custom_call.1} parent=1 // pred_region
      %55 = dma.done [#allocation5], 16
    $region21: #{tpu_custom_call.1} parent=1 // pred_fallthru
      _
    // Predicated region
    $region22: #{tpu_custom_call.1} parent=1 // pred_check
      _
    $region23: #{tpu_custom_call.1} parent=1 // pred_check_branch
      %57 = sbr.rel (0) target = $region25
    $region24: #{tpu_custom_call.1} parent=1 // pred_region
      %59 = dma.done [#allocation8], 16
    $region25: #{tpu_custom_call.1} parent=1 // pred_fallthru
      _
    // Predicated region
    $region26: #{tpu_custom_call.1} parent=1 // pred_check
      _
    $region27: #{tpu_custom_call.1} parent=1 // pred_check_branch
      %61 = sbr.rel (0) target = $region29
    $region28: #{tpu_custom_call.1} parent=1 // pred_region
      %63 = dma.done [#allocation6], 16
    $region29: #{tpu_custom_call.1} parent=1 // pred_fallthru
      _
    // Predicated region
    $region30: #{tpu_custom_call.1} parent=1 // pred_check
      _
    $region31: #{tpu_custom_call.1} parent=1 // pred_check_branch
      %65 = sbr.rel (0) target = $region33
    $region32: #{tpu_custom_call.1} parent=1 // pred_region
      %67 = dma.done [#allocation3], 128
    $region33: #{tpu_custom_call.1} parent=1 // pred_fallthru
      _
    %68 = sfence
    %s69 = sld [smem:[#allocation2]]
    %s70 = sld [smem:[#allocation2 + $0x1]]
    %v71 = vld [vmem:[#allocation10] sm:$0xff]
    %v72 = vstv %s69
    %v73 = vsub.f32 %v71, %v72
    %v74 = vmax.f32 %v73, 0.0
    %v75 = vstv %s70
    %v76 = vmul.f32 %v74, %v75
    %v77 = vsub.f32 %v71, %v76
    %v78 = vmax.f32 %v77, 0.0
    %v79 = vlog2.pop %v78
    %v80 = vmul.f32 %v79, 0.6931472
    %s81 = sld [smem:[#allocation9]]
    %v82 = vstv %s81
    %v83 = vmul.f32 %v82, %v80
    %v84 = vmul.f32 %v83, 1.442695
    %v85 = vpow.pop %v84
    %s86 = sld [smem:[#allocation7 + $0x3]]
    %v87 = vstv %s86
    %v88 = vadd.f32 %v87, 0.0
    %v89 = vmul.f32 %v88, %v78
    %s90 = sld [smem:[#allocation7 + $0x2]]
    %v91 = vstv %s90
    %v92 = vadd.f32 %v89, %v91
    %v93 = vmul.f32 %v92, %v78
    %s94 = sld [smem:[#allocation7 + $0x1]]
    %v95 = vstv %s94
    %v96 = vadd.f32 %v93, %v95
    %v97 = vmul.f32 %v96, %v78
    %s98 = sld [smem:[#allocation7]]
    %v99 = vstv %s98
    %v100 = vadd.f32 %v97, %v99
    %v101 = vmul.f32 %v100, %v85
    %102 = vst [vmem:[#allocation11] sm:$0xff] %v101
    // Predicated region
    $region34: #{tpu_custom_call.1} parent=1 // pred_check
      _
    $region35: #{tpu_custom_call.1} parent=1 // pred_check_branch
      %104 = sbr.rel (0) target = $region37
    $region36: #{tpu_custom_call.1} parent=1 // pred_region
      %106 = vsyncadd [#allocation4], 0
      %s108 = sshll.u32 [#allocation11], 4
      %s109 = int_to_ptr.vmem [resolvable:$true] %s108
      %s110 = sshll.u32 %s4, 4
      %s111 = int_to_ptr.hbm [resolvable:$true] %s110
      %113 = dma.vmem_to_hbm [thread:$0]  %s109, 128, %s111, [#allocation4]
    $region37: #{tpu_custom_call.1} parent=1 // pred_fallthru
      _
    // Predicated region
    $region38: #{tpu_custom_call.1} parent=1 // pred_check
      _
    $region39: #{tpu_custom_call.1} parent=1 // pred_check_branch
      %115 = sbr.rel (0) target = $region41
    $region40: #{tpu_custom_call.1} parent=1 // pred_region
      %117 = dma.done [#allocation4], 128
    $region41: #{tpu_custom_call.1} parent=1 // pred_fallthru
      _
    %118 = vsyncpa [#allocation3], 1
    %119 = vsyncpa [#allocation4], 1
    %120 = vsyncpa [#allocation5], 1
    %121 = vsyncpa [#allocation8], 1
    %122 = vsyncpa [#allocation6], 1

</llo_original>
